<compile_context>
chip_gen: v7x
topology: tpu7x:2x2x1
jax: 0.10.0
libtpu: 0.0.40
codegen_flags: <defaults>
</compile_context>

<pallas_src>
import functools

import jax
import jax.numpy as jnp
from jax.experimental import pallas as pl
from jax.experimental.pallas import tpu as pltpu


# ----------------------------------------------------------------------------
# Kernels
# ----------------------------------------------------------------------------
def _ln_kernel_rows(*refs, eps, inv_d, has_affine):
    """One logical row per slab row: block is (tile, D)."""
    if has_affine:
        y_ref, w_ref, b_ref, o_ref = refs
    else:
        y_ref, o_ref = refs
    y = y_ref[...].astype(jnp.float32)                        # (tile, D)
    s1 = jnp.sum(y, axis=-1, keepdims=True)
    s2 = jnp.sum(y * y, axis=-1, keepdims=True)
    mean = s1 * inv_d
    var = jnp.maximum(s2 * inv_d - mean * mean, 0.0)          # one-pass, clamped
    inv = jax.lax.rsqrt(var + eps)
    out = (y - mean) * inv
    if has_affine:
        out = out * w_ref[...].astype(jnp.float32) + b_ref[...].astype(jnp.float32)
    o_ref[...] = out.astype(o_ref.dtype)


def _ln_kernel_packed(*refs, eps, inv_d, has_affine):
    """k logical rows packed per slab row: block is (tile, 128), D = 128/k.

    Segmented per-row statistics via a (128,128) block-diagonal 0/1 matrix on
    the MXU: (y @ M) yields the per-segment sum broadcast across its segment.
    """
    if has_affine:
        y_ref, m_ref, w_ref, b_ref, o_ref = refs
    else:
        y_ref, m_ref, o_ref = refs
    y = y_ref[...].astype(jnp.float32)                        # (tile, 128)
    m = m_ref[...]                                            # (128, 128) f32
    s1 = jnp.dot(y, m, preferred_element_type=jnp.float32)
    s2 = jnp.dot(y * y, m, preferred_element_type=jnp.float32)
    mean = s1 * inv_d
    var = jnp.maximum(s2 * inv_d - mean * mean, 0.0)
    inv = jax.lax.rsqrt(var + eps)
    out = (y - mean) * inv
    if has_affine:
        out = out * w_ref[...].astype(jnp.float32) + b_ref[...].astype(jnp.float32)
    o_ref[...] = out.astype(o_ref.dtype)


# ----------------------------------------------------------------------------
# Tiling helpers
# ----------------------------------------------------------------------------
def _sublane(itemsize):
    # f32 -> 8, bf16 -> 16, int8/fp8 -> 32 (sublane packing of the dtype)
    return max(8, 32 // max(1, itemsize))


def _pick_row_tile(rows, d, itemsize, target_elems=1 << 20):
    """Row tile ~1M elements (~4 MiB f32) per input buffer; sublane aligned;
    capped so the grid has >= 2 steps when possible; prefers even division."""
    sub = _sublane(itemsize)
    tile = max(1, target_elems // max(1, d))
    if rows > sub:                       # keep >= 2 grid steps for megacore
        half = -(-rows // 2)
        half = -(-half // sub) * sub
        tile = min(tile, half)
    if tile >= rows:
        return rows                      # single full-extent block
    tile = max(sub, (tile // sub) * sub)
    cand = tile                          # prefer a tile dividing rows evenly
    while cand >= max(sub, tile // 2):
        if rows % cand == 0:
            return cand
        cand -= sub
    return tile


def _sanitize_tile(tile, rows, itemsize):
    sub = _sublane(itemsize)
    tile = min(int(tile), rows)
    if tile >= rows:
        return rows
    return max(sub, (tile // sub) * sub)


def _vmem_limit_bytes(tile, d_blk, itemsize):
    io_tile = tile * d_blk * itemsize          # one in / one out tile
    f32_tile = tile * d_blk * 4                # in-kernel f32 working copies
    resident = 128 * 128 * 4 + 2 * d_blk * 4   # segment matrix + weight + bias
    footprint = 2 * 2 * io_tile + 3 * f32_tile + resident + (2 << 20)
    # Clamp to a range that is safe on every generation (v7x physical = 64 MiB).
    return int(min(48 << 20, max(32 << 20, footprint)))


# ----------------------------------------------------------------------------
# Public wrapper:  LayerNormalization.forward(t, y, params)
# ----------------------------------------------------------------------------
def layer_norm_forward(t, y, weight=None, bias=None, *,
                       normalized_shape, eps=1e-5, row_tile=None):
    del t  # unused, as in the PyTorch module
    if isinstance(normalized_shape, int):
        normalized_shape = (normalized_shape,)
    normalized_shape = tuple(int(s) for s in normalized_shape)
    assert tuple(y.shape[y.ndim - len(normalized_shape):]) == normalized_shape, (
        "normalized_shape must match the trailing dims of y")

    orig_shape = y.shape
    d = 1
    for s in normalized_shape:
        d *= s
    rows = y.size // d
    itemsize = jnp.dtype(y.dtype).itemsize
    has_affine = weight is not None

    if has_affine:
        w_flat = weight.reshape(-1)
        b_flat = (bias.reshape(-1) if bias is not None
                  else jnp.zeros((d,), weight.dtype))

    # --- lane-dense packed path: D divides 128, rows divide evenly by k ------
    k = (128 // d) if (d < 128 and 128 % d == 0) else 1
    use_packed = k > 1 and rows % k == 0 and rows >= k

    if use_packed:
        rows_p, d_blk = rows // k, 128
        y2d = y.reshape(rows_p, d_blk)                 # pure metadata reshape
        tile = (_sanitize_tile(row_tile, rows_p, itemsize) if row_tile is not None
                else _pick_row_tile(rows_p, d_blk, itemsize))
        grid = (pl.cdiv(rows_p, tile),)

        seg_idx = jnp.arange(d_blk) // d               # block-diagonal segment-sum matrix
        seg = (seg_idx[:, None] == seg_idx[None, :]).astype(jnp.float32)

        kernel = functools.partial(_ln_kernel_packed, eps=float(eps),
                                   inv_d=1.0 / float(d), has_affine=has_affine)
        in_specs = [pl.BlockSpec((tile, d_blk), lambda i: (i, 0)),     # activations
                    pl.BlockSpec((d_blk, d_blk), lambda i: (0, 0))]    # segment matrix
        inputs = [y2d, seg]
        if has_affine:
            in_specs += [pl.BlockSpec((1, d_blk), lambda i: (0, 0)),
                         pl.BlockSpec((1, d_blk), lambda i: (0, 0))]
            inputs += [jnp.tile(w_flat, k).reshape(1, d_blk),
                       jnp.tile(b_flat, k).reshape(1, d_blk)]
        out_spec = pl.BlockSpec((tile, d_blk), lambda i: (i, 0))
        out_shape = jax.ShapeDtypeStruct((rows_p, d_blk), y.dtype)
    else:
        # --- generic path: one logical row per slab row ----------------------
        d_blk = d
        y2d = y.reshape(rows, d)
        tile = (_sanitize_tile(row_tile, rows, itemsize) if row_tile is not None
                else _pick_row_tile(rows, d, itemsize))
        grid = (pl.cdiv(rows, tile),)

        kernel = functools.partial(_ln_kernel_rows, eps=float(eps),
                                   inv_d=1.0 / float(d), has_affine=has_affine)
        in_specs = [pl.BlockSpec((tile, d), lambda i: (i, 0))]
        inputs = [y2d]
        if has_affine:
            in_specs += [pl.BlockSpec((1, d), lambda i: (0, 0)),
                         pl.BlockSpec((1, d), lambda i: (0, 0))]
            inputs += [w_flat.reshape(1, d), b_flat.reshape(1, d)]
        out_spec = pl.BlockSpec((tile, d), lambda i: (i, 0))
        out_shape = jax.ShapeDtypeStruct((rows, d), y.dtype)

    out2d = pl.pallas_call(
        kernel,
        out_shape=out_shape,
        grid_spec=pltpu.PrefetchScalarGridSpec(
            num_scalar_prefetch=0,
            grid=grid,
            in_specs=in_specs,
            out_specs=out_spec,
        ),
        compiler_params=pltpu.CompilerParams(
            dimension_semantics=("parallel",),                 # rows independent
            vmem_limit_bytes=_vmem_limit_bytes(tile, d_blk, itemsize)),
    )(*inputs)

    return out2d.reshape(orig_shape)


# ----------------------------------------------------------------------------
# Plain-JAX reference of F.layer_norm
# ----------------------------------------------------------------------------
def _layer_norm_ref(y, weight, bias, normalized_shape, eps):
    if isinstance(normalized_shape, int):
        normalized_shape = (normalized_shape,)
    axes = tuple(range(y.ndim - len(normalized_shape), y.ndim))
    yf = y.astype(jnp.float32)
    mean = jnp.mean(yf, axis=axes, keepdims=True)
    var = jnp.mean((yf - mean) ** 2, axis=axes, keepdims=True)
    out = (yf - mean) * jax.lax.rsqrt(var + eps)
    if weight is not None:
        out = out * weight.astype(jnp.float32) + bias.astype(jnp.float32)
    return out.astype(y.dtype)


if __name__ == "__main__":
    key = jax.random.PRNGKey(0)
    k1, k2, k3, k4, k5, k6, k7 = jax.random.split(key, 7)
    eps = 1e-5
    t = jnp.float32(0.0)

    # Case 1: LayerNormalization(32) on (batch=2, seq=8, hidden=32) -> packed
    # lane-dense path (k=4, packed rows=4, 128 lanes fully used).
    x = jax.random.normal(k1, (2, 8, 32), dtype=jnp.float32)
    w = 1.0 + 0.1 * jax.random.normal(k2, (32,), dtype=jnp.float32)
    b = 0.1 * jax.random.normal(k3, (32,), dtype=jnp.float32)
    y1 = jax.block_until_ready(layer_norm_forward(t, x, w, b,
                                                  normalized_shape=(32,), eps=eps))
    ref1 = _layer_norm_ref(x, w, b, (32,), eps)
    assert y1.shape == x.shape and y1.dtype == x.dtype
    assert bool(jnp.allclose(y1, ref1, rtol=1e-4, atol=1e-5)), \
        float(jnp.max(jnp.abs(y1 - ref1)))

    # Case 2: packed path with multiple grid steps and a partial final block
    # (rows=72 -> packed rows=18, row_tile=8 -> grid of 3, last block partial).
    x2 = jax.random.normal(k4, (9, 8, 32), dtype=jnp.float32)
    y2 = jax.block_until_ready(layer_norm_forward(t, x2, w, b,
                                                  normalized_shape=(32,), eps=eps,
                                                  row_tile=8))
    ref2 = _layer_norm_ref(x2, w, b, (32,), eps)
    assert bool(jnp.allclose(y2, ref2, rtol=1e-4, atol=1e-5))

    # Case 3: elementwise_affine=False -> dedicated no-affine kernel variant.
    y3 = jax.block_until_ready(layer_norm_forward(t, x, None, None,
                                                  normalized_shape=(32,), eps=eps))
    ref3 = _layer_norm_ref(x, None, None, (32,), eps)
    assert bool(jnp.allclose(y3, ref3, rtol=1e-4, atol=1e-5))

    # Case 4: D = 256 (multiple of 128) -> generic lane-dense path, grid of 2
    # (exercises the megacore split of the row axis).
    x4 = jax.random.normal(k5, (4, 8, 256), dtype=jnp.float32)
    w4 = 1.0 + 0.1 * jax.random.normal(k6, (256,), dtype=jnp.float32)
    b4 = 0.1 * jax.random.normal(k7, (256,), dtype=jnp.float32)
    y4 = jax.block_until_ready(layer_norm_forward(t, x4, w4, b4,
                                                  normalized_shape=(256,), eps=eps))
    ref4 = _layer_norm_ref(x4, w4, b4, (256,), eps)
    assert bool(jnp.allclose(y4, ref4, rtol=1e-4, atol=1e-5))

    # Case 5: D = 48 (neither divides nor is divided by 128) -> generic masked
    # path (legal: D equals the full array extent).
    x5 = jax.random.normal(k5, (4, 6, 48), dtype=jnp.float32)
    w5 = jnp.ones((48,), jnp.float32)
    b5 = jnp.zeros((48,), jnp.float32)
    y5 = jax.block_until_ready(layer_norm_forward(t, x5, w5, b5,
                                                  normalized_shape=(48,), eps=eps))
    ref5 = _layer_norm_ref(x5, w5, b5, (48,), eps)
    assert bool(jnp.allclose(y5, ref5, rtol=1e-4, atol=1e-5))

    # Case 6: bf16 input, D = 128 (already lane-dense), bf16-sublane tiling.
    x6 = jax.random.normal(k6, (2, 16, 128), dtype=jnp.bfloat16)
    w6 = (1.0 + 0.1 * jax.random.normal(k7, (128,), jnp.float32)).astype(jnp.bfloat16)
    b6 = (0.1 * jax.random.normal(k1, (128,), jnp.float32)).astype(jnp.bfloat16)
    y6 = jax.block_until_ready(layer_norm_forward(t, x6, w6, b6,
                                                  normalized_shape=(128,), eps=eps))
    ref6 = _layer_norm_ref(x6, w6, b6, (128,), eps)
    assert y6.dtype == jnp.bfloat16
    assert bool(jnp.allclose(y6.astype(jnp.float32), ref6.astype(jnp.float32),
                             rtol=2e-2, atol=2e-2))

    print("KERNEL_OK")
</pallas_src>

<mosaic_0001>
module attributes {stable_mosaic.version = 11 : i64} {
  func.func @_ln_kernel_packed(%arg0: i32, %arg1: memref<4x128xf32, #tpu.memory_space<vmem>>, %arg2: memref<128x128xf32, #tpu.memory_space<vmem>>, %arg3: memref<1x128xf32, #tpu.memory_space<vmem>>, %arg4: memref<1x128xf32, #tpu.memory_space<vmem>>, %arg5: memref<4x128xf32, #tpu.memory_space<vmem>>) attributes {dimension_semantics = [#tpu.dimension_semantics<parallel>], iteration_bounds = array<i64: 1>, scalar_prefetch = 0 : i64, scratch_operands = 0 : i64, tpu.core_type = #tpu.core_type<tc>, window_params = [{transform_indices = @transform_0, window_bounds = array<i64: 4, 128>}, {pipeline_mode = #tpu.pipeline_mode<synchronous>, transform_indices = @transform_1, window_bounds = array<i64: 128, 128>}, {pipeline_mode = #tpu.pipeline_mode<synchronous>, transform_indices = @transform_2, window_bounds = array<i64: 1, 128>}, {pipeline_mode = #tpu.pipeline_mode<synchronous>, transform_indices = @transform_3, window_bounds = array<i64: 1, 128>}, {transform_indices = @transform_4, window_bounds = array<i64: 4, 128>}]} {
    %c0 = arith.constant 0 : index
    %c0_0 = arith.constant 0 : index
    %0 = vector.load %arg1[%c0, %c0_0] : memref<4x128xf32, #tpu.memory_space<vmem>>, vector<4x128xf32>
    %c0_1 = arith.constant 0 : index
    %c0_2 = arith.constant 0 : index
    %1 = vector.load %arg2[%c0_1, %c0_2] : memref<128x128xf32, #tpu.memory_space<vmem>>, vector<128x128xf32>
    %cst = arith.constant dense<0.000000e+00> : vector<4x128xf32>
    %2 = tpu.matmul %0, %1, %cst {dimension_numbers = #tpu.dot_dimension_numbers<[1], [0], [0], [1], [0, 0, 1, 1], [], []>} : vector<4x128xf32>, vector<128x128xf32>, vector<4x128xf32> -> vector<4x128xf32>
    %3 = arith.mulf %0, %0 : vector<4x128xf32>
    %cst_3 = arith.constant dense<0.000000e+00> : vector<4x128xf32>
    %4 = tpu.matmul %3, %1, %cst_3 {dimension_numbers = #tpu.dot_dimension_numbers<[1], [0], [0], [1], [0, 0, 1, 1], [], []>} : vector<4x128xf32>, vector<128x128xf32>, vector<4x128xf32> -> vector<4x128xf32>
    %cst_4 = arith.constant 3.125000e-02 : f32
    %5 = vector.broadcast %cst_4 : f32 to vector<4x128xf32>
    %6 = arith.mulf %2, %5 : vector<4x128xf32>
    %cst_5 = arith.constant 3.125000e-02 : f32
    %7 = vector.broadcast %cst_5 : f32 to vector<4x128xf32>
    %8 = arith.mulf %4, %7 : vector<4x128xf32>
    %9 = arith.mulf %6, %6 : vector<4x128xf32>
    %10 = arith.subf %8, %9 : vector<4x128xf32>
    %cst_6 = arith.constant 0.000000e+00 : f32
    %11 = vector.broadcast %cst_6 : f32 to vector<4x128xf32>
    %12 = arith.maximumf %10, %11 : vector<4x128xf32>
    %cst_7 = arith.constant 9.99999974E-6 : f32
    %13 = vector.broadcast %cst_7 : f32 to vector<4x128xf32>
    %14 = arith.addf %12, %13 : vector<4x128xf32>
    %15 = math.rsqrt %14 : vector<4x128xf32>
    %16 = arith.subf %0, %6 : vector<4x128xf32>
    %17 = arith.mulf %16, %15 : vector<4x128xf32>
    %c0_8 = arith.constant 0 : index
    %c0_9 = arith.constant 0 : index
    %18 = vector.load %arg3[%c0_8, %c0_9] : memref<1x128xf32, #tpu.memory_space<vmem>>, vector<1x128xf32>
    %19 = vector.broadcast %18 : vector<1x128xf32> to vector<4x128xf32>
    %20 = arith.mulf %17, %19 : vector<4x128xf32>
    %c0_10 = arith.constant 0 : index
    %c0_11 = arith.constant 0 : index
    %21 = vector.load %arg4[%c0_10, %c0_11] : memref<1x128xf32, #tpu.memory_space<vmem>>, vector<1x128xf32>
    %22 = vector.broadcast %21 : vector<1x128xf32> to vector<4x128xf32>
    %23 = arith.addf %20, %22 : vector<4x128xf32>
    %c0_12 = arith.constant 0 : index
    %c0_13 = arith.constant 0 : index
    %24 = vector.load %arg5[%c0_12, %c0_13] : memref<4x128xf32, #tpu.memory_space<vmem>>, vector<4x128xf32>
    tpu.vector_store %arg5[%c0_12, %c0_13], %23 {strides = array<i32>} : memref<4x128xf32, #tpu.memory_space<vmem>>, vector<4x128xf32>,
    return
  }
  func.func @transform_0(%arg0: i32) -> (i32, i32) {
    %c0_i32 = arith.constant 0 : i32
    %c0_i32_0 = arith.constant 0 : i32
    return %arg0, %c0_i32 : i32, i32
  }
  func.func @transform_1(%arg0: i32) -> (i32, i32) {
    %c0_i32 = arith.constant 0 : i32
    %c0_i32_0 = arith.constant 0 : i32
    %c0_i32_1 = arith.constant 0 : i32
    return %c0_i32, %c0_i32_0 : i32, i32
  }
  func.func @transform_2(%arg0: i32) -> (i32, i32) {
    %c0_i32 = arith.constant 0 : i32
    %c0_i32_0 = arith.constant 0 : i32
    %c0_i32_1 = arith.constant 0 : i32
    return %c0_i32, %c0_i32_0 : i32, i32
  }
  func.func @transform_3(%arg0: i32) -> (i32, i32) {
    %c0_i32 = arith.constant 0 : i32
    %c0_i32_0 = arith.constant 0 : i32
    %c0_i32_1 = arith.constant 0 : i32
    return %c0_i32, %c0_i32_0 : i32, i32
  }
  func.func @transform_4(%arg0: i32) -> (i32, i32) {
    %c0_i32 = arith.constant 0 : i32
    %c0_i32_0 = arith.constant 0 : i32
    return %arg0, %c0_i32 : i32, i32
  }
}

</mosaic_0001>

<llo_original>
// kernel: tpu_custom_call.1
$region0: #{tpu_custom_call.1}
  #allocation0 [shape = 'u32[]', space=smem, size = 0x4, offset = 0x4, fixed_abs, tag = 'smem constant byte address 0x4 - core index']
  #allocation1 [shape = 'u32[144,128]{1,0:T(1,128)}', space=vmem, size = 0x12000, scoped, tag = 'internal scratch']
  %s0 = inlined_call_operand.hbm [shape: f32[4,128], index: 0, kind: input, shape index: {}]
  %s1 = inlined_call_operand.hbm [shape: f32[128,128], index: 1, kind: input, shape index: {}]
  %s2 = inlined_call_operand.vmem [shape: f32[1,128], index: 2, kind: input, shape index: {}]
  %s3 = inlined_call_operand.vmem [shape: f32[1,128], index: 3, kind: input, shape index: {}]
  %s4 = inlined_call_operand.hbm [shape: f32[4,128], index: 4, kind: output, shape index: {}]
  %s5 = sld [smem:[#allocation0]]
  $region34: #{tpu_custom_call.1} parent=0
    _
  %s7 = ssub.s32 1, %s5
  %s8 = scalar_select 0, %s7, %s5
  $region1: #{tpu_custom_call.1} parent=0
    #allocation2 [shape = 'u8[2048]{0}', space=vmem, size = 0x800, scoped, tag = 'input window, operand 0, single buffered']
    #allocation3 [shape = 's32[1]{0}', space=sflag, size = 0x4, scoped, tag = 'scoped memory for tpu_custom_call.1']
    #allocation4 [shape = 's32[1]{0}', space=sflag, size = 0x4, scoped, tag = 'scoped memory for tpu_custom_call.1']
    #allocation5 [shape = 'u8[65536]{0}', space=vmem, size = 0x10000, scoped, tag = 'input window, operand 1, single buffered']
    #allocation6 [shape = 's32[1]{0}', space=sflag, size = 0x4, scoped, tag = 'scoped memory for tpu_custom_call.1']
    #allocation7 [shape = 'u8[2048]{0}', space=vmem, size = 0x800, scoped, tag = 'output window, operand 0, single buffered']
    %9 = vsyncpa [#allocation3], 0
    %10 = vsyncpa [#allocation6], 0
    %11 = vsyncpa [#allocation4], 0
    // Predicated region
    $region2: #{tpu_custom_call.1} parent=1 // pred_check
      _
    $region3: #{tpu_custom_call.1} parent=1 // pred_check_branch
      %13 = sbr.rel (0) target = $region5
    $region4: #{tpu_custom_call.1} parent=1 // pred_region
      %s15 = ssub.s32 64, 64
      %16 = vsyncadd [#allocation3], %s15
      %s18 = sshll.u32 [#allocation2], 4
      %s19 = int_to_ptr.vmem [resolvable:$true] %s18
      %21 = dma.hbm_to_vmem [thread:$0]  %s0, 64, %s19, [#allocation3]
    $region5: #{tpu_custom_call.1} parent=1 // pred_fallthru
      _
    // Predicated region
    $region6: #{tpu_custom_call.1} parent=1 // pred_check
      _
    $region7: #{tpu_custom_call.1} parent=1 // pred_check_branch
      %23 = sbr.rel (0) target = $region9
    $region8: #{tpu_custom_call.1} parent=1 // pred_region
      %s25 = ssub.s32 2048, 2048
      %26 = vsyncadd [#allocation6], %s25
      %s27 = sshll.u32 [#allocation5], 4
      %s28 = int_to_ptr.vmem [resolvable:$true] %s27
      %33 = dma.hbm_to_vmem [thread:$0]  %s1, 2048, %s28, [#allocation6], 128, 128, 8
    $region9: #{tpu_custom_call.1} parent=1 // pred_fallthru
      _
    // Predicated region
    $region10: #{tpu_custom_call.1} parent=1 // pred_check
      _
    $region11: #{tpu_custom_call.1} parent=1 // pred_check_branch
      %35 = sbr.rel (0) target = $region13
    $region12: #{tpu_custom_call.1} parent=1 // pred_region
      _
    $region13: #{tpu_custom_call.1} parent=1 // pred_fallthru
      _
    // Predicated region
    $region14: #{tpu_custom_call.1} parent=1 // pred_check
      _
    $region15: #{tpu_custom_call.1} parent=1 // pred_check_branch
      %37 = sbr.rel (0) target = $region17
    $region16: #{tpu_custom_call.1} parent=1 // pred_region
      _
    $region17: #{tpu_custom_call.1} parent=1 // pred_fallthru
      _
    // Predicated region
    $region18: #{tpu_custom_call.1} parent=1 // pred_check
      _
    $region19: #{tpu_custom_call.1} parent=1 // pred_check_branch
      %39 = sbr.rel (0) target = $region21
    $region20: #{tpu_custom_call.1} parent=1 // pred_region
      %40 = dma.done [#allocation3], 64
    $region21: #{tpu_custom_call.1} parent=1 // pred_fallthru
      _
    // Predicated region
    $region22: #{tpu_custom_call.1} parent=1 // pred_check
      _
    $region23: #{tpu_custom_call.1} parent=1 // pred_check_branch
      %42 = sbr.rel (0) target = $region25
    $region24: #{tpu_custom_call.1} parent=1 // pred_region
      %43 = dma.done [#allocation6], 2048
    $region25: #{tpu_custom_call.1} parent=1 // pred_fallthru
      _
    %v44 = vld [vmem:[#allocation2] sm:$0xf]
    %v45 = vld [vmem:[#allocation5] sm:$0xff]
    %v46 = vld [vmem:[#allocation5 + $0x8] sm:$0xff]
    %v47 = vld [vmem:[#allocation5 + $0x10] sm:$0xff]
    %v48 = vld [vmem:[#allocation5 + $0x18] sm:$0xff]
    %v49 = vld [vmem:[#allocation5 + $0x20] sm:$0xff]
    %v50 = vld [vmem:[#allocation5 + $0x28] sm:$0xff]
    %v51 = vld [vmem:[#allocation5 + $0x30] sm:$0xff]
    %v52 = vld [vmem:[#allocation5 + $0x38] sm:$0xff]
    %v53 = vld [vmem:[#allocation5 + $0x40] sm:$0xff]
    %v54 = vld [vmem:[#allocation5 + $0x48] sm:$0xff]
    %v55 = vld [vmem:[#allocation5 + $0x50] sm:$0xff]
    %v56 = vld [vmem:[#allocation5 + $0x58] sm:$0xff]
    %v57 = vld [vmem:[#allocation5 + $0x60] sm:$0xff]
    %v58 = vld [vmem:[#allocation5 + $0x68] sm:$0xff]
    %v59 = vld [vmem:[#allocation5 + $0x70] sm:$0xff]
    %v60 = vld [vmem:[#allocation5 + $0x78] sm:$0xff]
    %61 = vmatprep.subr.mxu0 0.0
    %62 = vmatpush1.msra.mxu0 %v45
    %63 = vmatprep.subr.mxu0 0.0
    %64 = vmatpush1.msra.mxu0 %v46
    %65 = vmatprep.subr.mxu0 0.0
    %66 = vmatpush1.msra.mxu0 %v47
    %67 = vmatprep.subr.mxu0 0.0
    %68 = vmatpush1.msra.mxu0 %v48
    %69 = vmatprep.subr.mxu0 0.0
    %70 = vmatpush1.msra.mxu0 %v49
    %71 = vmatprep.subr.mxu0 0.0
    %72 = vmatpush1.msra.mxu0 %v50
    %73 = vmatprep.subr.mxu0 0.0
    %74 = vmatpush1.msra.mxu0 %v51
    %75 = vmatprep.subr.mxu0 0.0
    %76 = vmatpush1.msra.mxu0 %v52
    %77 = vmatprep.subr.mxu0 0.0
    %78 = vmatpush1.msra.mxu0 %v53
    %79 = vmatprep.subr.mxu0 0.0
    %80 = vmatpush1.msra.mxu0 %v54
    %81 = vmatprep.subr.mxu0 0.0
    %82 = vmatpush1.msra.mxu0 %v55
    %83 = vmatprep.subr.mxu0 0.0
    %84 = vmatpush1.msra.mxu0 %v56
    %85 = vmatprep.subr.mxu0 0.0
    %86 = vmatpush1.msra.mxu0 %v57
    %87 = vmatprep.subr.mxu0 0.0
    %88 = vmatpush1.msra.mxu0 %v58
    %89 = vmatprep.subr.mxu0 0.0
    %90 = vmatpush1.msra.mxu0 %v59
    %91 = vmatprep.subr.mxu0 0.0
    %92 = vmatpush1.msra.mxu0 %v60
    %93 = vmatprep.subr.mxu0 0.0
    %94 = vmatpush1.msra.mxu0 0.0
    %95 = vmatprep.subr.mxu0 0.0
    %96 = vmatpush1.msra.mxu0 0.0
    %97 = vmatprep.subr.mxu0 0.0
    %98 = vmatpush1.msra.mxu0 0.0
    %99 = vmatprep.subr.mxu0 0.0
    %100 = vmatpush1.msra.mxu0 0.0
    %101 = vmatprep.subr.mxu0 0.0
    %102 = vmatpush1.msra.mxu0 0.0
    %103 = vmatprep.subr.mxu0 0.0
    %104 = vmatpush1.msra.mxu0 0.0
    %105 = vmatprep.subr.mxu0 0.0
    %106 = vmatpush1.msra.mxu0 0.0
    %107 = vmatprep.subr.mxu0 0.0
    %108 = vmatpush1.msra.mxu0 0.0
    %109 = vmatprep.subr.mxu0 0.0
    %110 = vmatpush1.msra.mxu0 0.0
    %111 = vmatprep.subr.mxu0 0.0
    %112 = vmatpush1.msra.mxu0 0.0
    %113 = vmatprep.subr.mxu0 0.0
    %114 = vmatpush1.msra.mxu0 0.0
    %115 = vmatprep.subr.mxu0 0.0
    %116 = vmatpush1.msra.mxu0 0.0
    %117 = vmatprep.subr.mxu0 0.0
    %118 = vmatpush1.msra.mxu0 0.0
    %119 = vmatprep.subr.mxu0 0.0
    %120 = vmatpush1.msra.mxu0 0.0
    %121 = vmatprep.subr.mxu0 0.0
    %122 = vmatpush1.msra.mxu0 0.0
    %123 = vmatprep.subr.mxu0 0.0
    %124 = vmatpush1.msra.mxu0 0.0
    %125 = vmatprep.mubr.f32.mxu0 0.0
    %126 = vmatmul.mubr.f32.gmra.mrb[0].mxu0 %v44
    %v127 = vpop.f32.mrb[0].mxu0
    %v128 = vadd.f32 0.0, %v127
    %v129 = vpop.f32.mrb[0].mxu0
    %130 = vdwg.mxu0
    %v131 = vmul.f32 %v44, %v44
    %132 = vmatprep.subr.mxu0 0.0
    %133 = vmatpush1.msra.mxu0 %v45
    %134 = vmatprep.subr.mxu0 0.0
    %135 = vmatpush1.msra.mxu0 %v46
    %136 = vmatprep.subr.mxu0 0.0
    %137 = vmatpush1.msra.mxu0 %v47
    %138 = vmatprep.subr.mxu0 0.0
    %139 = vmatpush1.msra.mxu0 %v48
    %140 = vmatprep.subr.mxu0 0.0
    %141 = vmatpush1.msra.mxu0 %v49
    %142 = vmatprep.subr.mxu0 0.0
    %143 = vmatpush1.msra.mxu0 %v50
    %144 = vmatprep.subr.mxu0 0.0
    %145 = vmatpush1.msra.mxu0 %v51
    %146 = vmatprep.subr.mxu0 0.0
    %147 = vmatpush1.msra.mxu0 %v52
    %148 = vmatprep.subr.mxu0 0.0
    %149 = vmatpush1.msra.mxu0 %v53
    %150 = vmatprep.subr.mxu0 0.0
    %151 = vmatpush1.msra.mxu0 %v54
    %152 = vmatprep.subr.mxu0 0.0
    %153 = vmatpush1.msra.mxu0 %v55
    %154 = vmatprep.subr.mxu0 0.0
    %155 = vmatpush1.msra.mxu0 %v56
    %156 = vmatprep.subr.mxu0 0.0
    %157 = vmatpush1.msra.mxu0 %v57
    %158 = vmatprep.subr.mxu0 0.0
    %159 = vmatpush1.msra.mxu0 %v58
    %160 = vmatprep.subr.mxu0 0.0
    %161 = vmatpush1.msra.mxu0 %v59
    %162 = vmatprep.subr.mxu0 0.0
    %163 = vmatpush1.msra.mxu0 %v60
    %164 = vmatprep.subr.mxu0 0.0
    %165 = vmatpush1.msra.mxu0 0.0
    %166 = vmatprep.subr.mxu0 0.0
    %167 = vmatpush1.msra.mxu0 0.0
    %168 = vmatprep.subr.mxu0 0.0
    %169 = vmatpush1.msra.mxu0 0.0
    %170 = vmatprep.subr.mxu0 0.0
    %171 = vmatpush1.msra.mxu0 0.0
    %172 = vmatprep.subr.mxu0 0.0
    %173 = vmatpush1.msra.mxu0 0.0
    %174 = vmatprep.subr.mxu0 0.0
    %175 = vmatpush1.msra.mxu0 0.0
    %176 = vmatprep.subr.mxu0 0.0
    %177 = vmatpush1.msra.mxu0 0.0
    %178 = vmatprep.subr.mxu0 0.0
    %179 = vmatpush1.msra.mxu0 0.0
    %180 = vmatprep.subr.mxu0 0.0
    %181 = vmatpush1.msra.mxu0 0.0
    %182 = vmatprep.subr.mxu0 0.0
    %183 = vmatpush1.msra.mxu0 0.0
    %184 = vmatprep.subr.mxu0 0.0
    %185 = vmatpush1.msra.mxu0 0.0
    %186 = vmatprep.subr.mxu0 0.0
    %187 = vmatpush1.msra.mxu0 0.0
    %188 = vmatprep.subr.mxu0 0.0
    %189 = vmatpush1.msra.mxu0 0.0
    %190 = vmatprep.subr.mxu0 0.0
    %191 = vmatpush1.msra.mxu0 0.0
    %192 = vmatprep.subr.mxu0 0.0
    %193 = vmatpush1.msra.mxu0 0.0
    %194 = vmatprep.subr.mxu0 0.0
    %195 = vmatpush1.msra.mxu0 0.0
    %196 = vmatprep.mubr.f32.mxu0 0.0
    %197 = vmatmul.mubr.f32.gmra.mrb[0].mxu0 %v131
    %v198 = vpop.f32.mrb[0].mxu0
    %v199 = vadd.f32 0.0, %v198
    %v200 = vpop.f32.mrb[0].mxu0
    %201 = vdwg.mxu0
    %v202 = vmul.f32 %v128, 0.03125
    %v203 = vmul.f32 %v199, 0.03125
    %v204 = vmul.f32 %v202, %v202
    %v205 = vsub.f32 %v203, %v204
    %v206 = vmax.f32 %v205, 0.0
    %v207 = vadd.f32 %v206, 1e-05
    %v208 = vrsqrt.pop %v207
    %v209 = vsub.f32 %v44, %v202
    %v210 = vmul.f32 %v209, %v208
    %v211 = vld [vmem:[%s2] sm:$0x1]
    %v213 = vlaneseq
    %v214 = vshrl.u32 %v213, 7
    %v215 = vsub.s32 0, %v214
    %v216 = vrot.slane %v211, %v215
    %v218 = vmul.f32 %v210, %v216
    %v219 = vld [vmem:[%s3] sm:$0x1]
    %v221 = vlaneseq
    %v222 = vshrl.u32 %v221, 7
    %v223 = vsub.s32 0, %v222
    %v224 = vrot.slane %v219, %v223
    %v226 = vadd.f32 %v218, %v224
    %227 = vst [vmem:[#allocation7] sm:$0xf] %v226
    // Predicated region
    $region26: #{tpu_custom_call.1} parent=1 // pred_check
      _
    $region27: #{tpu_custom_call.1} parent=1 // pred_check_branch
      %229 = sbr.rel (0) target = $region29
    $region28: #{tpu_custom_call.1} parent=1 // pred_region
      %s231 = ssub.s32 64, 64
      %232 = vsyncadd [#allocation4], %s231
      %s234 = sshll.u32 [#allocation7], 4
      %s235 = int_to_ptr.vmem [resolvable:$true] %s234
      %237 = dma.vmem_to_hbm [thread:$0]  %s235, 64, %s4, [#allocation4]
    $region29: #{tpu_custom_call.1} parent=1 // pred_fallthru
      _
    // Predicated region
    $region30: #{tpu_custom_call.1} parent=1 // pred_check
      _
    $region31: #{tpu_custom_call.1} parent=1 // pred_check_branch
      %239 = sbr.rel (0) target = $region33
    $region32: #{tpu_custom_call.1} parent=1 // pred_region
      %240 = dma.done [#allocation4], 64
    $region33: #{tpu_custom_call.1} parent=1 // pred_fallthru
      _
    %241 = vsyncpa [#allocation3], 1
    %242 = vsyncpa [#allocation6], 1
    %243 = vsyncpa [#allocation4], 1

</llo_original>
